<compile_context>
chip_gen: v7x
topology: tpu7x:2x2x1
jax: 0.10.0
libtpu: 0.0.40
codegen_flags: <defaults>
</compile_context>

<pallas_src>
import functools

import jax
import jax.numpy as jnp
from jax.experimental import pallas as pl
from jax.experimental.pallas import tpu as pltpu


# ----------------------------------------------------------------------------
# Fused kernel (typical SE shapes): squeeze -> fc1 -> ReLU -> fc2 -> Hsigmoid
# -> excitation, all in VMEM; x is read from HBM once and written once.
# ----------------------------------------------------------------------------
def _se_fused_kernel(x_ref, w_ref, o_ref, *, inv_hw, cr):
    # x_ref / o_ref : (TB, C, HW)  -- C on sublanes, flattened spatial on lanes
    # w_ref         : (C, 2*Cr)    -- [fc1_w^T | fc2_w], f32
    w1t = w_ref[:, :cr]                                          # (C, Cr)
    w2 = w_ref[:, cr:]                                           # (C, Cr)

    # Squeeze: global average pool over spatial lanes, accumulated in f32.
    pooled = jnp.sum(x_ref[...].astype(jnp.float32), axis=-1,
                     keepdims=True) * inv_hw                     # (TB, C, 1)

    # fc1 + ReLU on the VPU (matvec FLOPs are negligible; avoid N<128 MXU).
    h = jnp.maximum(jnp.sum(pooled * w1t[None, :, :], axis=1), 0.0)  # (TB, Cr)

    # fc2 on the VPU; result lands directly in (sublane=C, lane=1) layout.
    s = jnp.sum(h[:, None, :] * w2[None, :, :], axis=-1,
                keepdims=True)                                   # (TB, C, 1)

    # Hsigmoid: relu6(s + 3) / 6
    s = jnp.clip(s + 3.0, 0.0, 6.0) * (1.0 / 6.0)

    # Excitation: re-read x from the ref (narrow live range) and scale.
    o_ref[...] = (x_ref[...] * s).astype(o_ref.dtype)


# ----------------------------------------------------------------------------
# Spatial-tiled fallback (large feature maps): pass 1 = pooled sums + scale,
# pass 2 = apply the scale.  Spatial tiles are 128-lane aligned.
# ----------------------------------------------------------------------------
def _se_scale_kernel(x_ref, w_ref, s_ref, acc_ref, *, inv_hw, cr, hw, hw_tile):
    st = pl.program_id(1)

    @pl.when(st == 0)
    def _():
        acc_ref[...] = jnp.zeros_like(acc_ref)

    x = x_ref[...].astype(jnp.float32)                     # (TB, C, HW_TILE)
    # Mask lanes past the valid spatial extent (ragged last tile).
    lane = jax.lax.broadcasted_iota(jnp.int32, x.shape, 2)
    x = jnp.where(lane < (hw - st * hw_tile), x, 0.0)
    acc_ref[...] += jnp.sum(x, axis=-1, keepdims=True)

    @pl.when(st == pl.num_programs(1) - 1)
    def _():
        pooled = acc_ref[...] * inv_hw                      # (TB, C, 1)
        w1t = w_ref[:, :cr]
        w2 = w_ref[:, cr:]
        h = jnp.maximum(jnp.sum(pooled * w1t[None, :, :], axis=1), 0.0)
        s = jnp.sum(h[:, None, :] * w2[None, :, :], axis=-1, keepdims=True)
        s_ref[...] = jnp.clip(s + 3.0, 0.0, 6.0) * (1.0 / 6.0)


def _se_apply_kernel(x_ref, s_ref, o_ref):
    o_ref[...] = (x_ref[...] * s_ref[...]).astype(o_ref.dtype)


# ----------------------------------------------------------------------------
# Wrapper helpers
# ----------------------------------------------------------------------------
def _vmem_limit_bytes():
    """Generation-aware scoped-VMEM limit: ~75% of physical (96 MiB on
    v5e/v6e's 128 MiB, 48 MiB on v7x's 64 MiB); conservative if unknown."""
    cap = None
    try:
        cap = getattr(pltpu.get_tpu_info(), "vmem_capacity_bytes", None)
    except Exception:
        cap = None
    if not cap:
        cap = 64 << 20                    # conservative default (v7x physical)
    return int(min(int(cap * 0.75), 100 << 20))


def _pick_tb(b, per_image_bytes, target_bytes):
    """Largest divisor of b giving ~target_bytes blocks while keeping >= 2
    grid steps (so the parallel batch axis can shard across v7x's 2 cores)."""
    cap = max(1, int(target_bytes // max(per_image_bytes, 1)))
    cap = min(cap, b)
    if b >= 2:
        cap = min(cap, b // 2)
    cap = max(cap, 1)
    tb = 1
    for d in range(1, cap + 1):
        if b % d == 0:
            tb = d
    return tb


def _se_fused(x3, w_cat, *, cr, tb, inv_hw, vmem_limit):
    b, c, hw = x3.shape
    itemsize = jnp.dtype(x3.dtype).itemsize
    flops = b * (3 * c * hw + 4 * c * cr)
    bytes_accessed = 2 * b * c * hw * itemsize + int(w_cat.size) * 4
    # TODO(synk): for small stages where HW % 128 != 0 (7x7/14x14) the stores
    # are masked (partial-lane vst); a lane-dense repack would need an extra
    # NCHW relayout in HBM, so it is intentionally not done here.
    return pl.pallas_call(
        functools.partial(_se_fused_kernel, inv_hw=inv_hw, cr=cr),
        out_shape=jax.ShapeDtypeStruct((b, c, hw), x3.dtype),
        grid=(b // tb,),
        in_specs=[
            pl.BlockSpec((tb, c, hw), lambda i: (i, 0, 0)),
            pl.BlockSpec((c, 2 * cr), lambda i: (0, 0)),
        ],
        out_specs=pl.BlockSpec((tb, c, hw), lambda i: (i, 0, 0)),
        compiler_params=pltpu.CompilerParams(
            dimension_semantics=("parallel",),
            vmem_limit_bytes=vmem_limit),
        cost_estimate=pl.CostEstimate(flops=flops, transcendentals=0,
                                      bytes_accessed=bytes_accessed),
    )(x3, w_cat)


def _se_tiled(x3, w_cat, *, cr, inv_hw, target_block_bytes, vmem_limit):
    b, c, hw = x3.shape
    itemsize = jnp.dtype(x3.dtype).itemsize
    # Lane-aligned (multiple of 128) spatial tile sized to the block budget.
    hw_tile = max(128, (int(target_block_bytes) // (c * itemsize)) // 128 * 128)
    hw_tile = int(min(hw_tile, hw))
    num_s = -(-hw // hw_tile)

    # Pass 1: pooled sums over spatial tiles -> fc1 -> ReLU -> fc2 -> Hsigmoid.
    scale = pl.pallas_call(
        functools.partial(_se_scale_kernel, inv_hw=inv_hw, cr=cr,
                          hw=hw, hw_tile=hw_tile),
        out_shape=jax.ShapeDtypeStruct((b, c, 1), jnp.float32),
        grid=(b, num_s),
        in_specs=[
            pl.BlockSpec((1, c, hw_tile), lambda i, s: (i, 0, s)),
            pl.BlockSpec((c, 2 * cr), lambda i, s: (0, 0)),
        ],
        out_specs=pl.BlockSpec((1, c, 1), lambda i, s: (i, 0, 0)),
        scratch_shapes=[pltpu.VMEM((1, c, 1), jnp.float32)],
        compiler_params=pltpu.CompilerParams(
            dimension_semantics=("parallel", "arbitrary"),
            vmem_limit_bytes=vmem_limit),
    )(x3, w_cat)

    # Pass 2: excitation, fully parallel over batch and spatial tiles.
    return pl.pallas_call(
        _se_apply_kernel,
        out_shape=jax.ShapeDtypeStruct((b, c, hw), x3.dtype),
        grid=(b, num_s),
        in_specs=[
            pl.BlockSpec((1, c, hw_tile), lambda i, s: (i, 0, s)),
            pl.BlockSpec((1, c, 1), lambda i, s: (i, 0, 0)),
        ],
        out_specs=pl.BlockSpec((1, c, hw_tile), lambda i, s: (i, 0, s)),
        compiler_params=pltpu.CompilerParams(
            dimension_semantics=("parallel", "parallel"),
            vmem_limit_bytes=vmem_limit),
    )(x3, scale)


def se_module(x, fc1_w, fc2_w, *, target_block_bytes=2 << 20,
              max_fused_block_bytes=4 << 20):
    """SEModule forward.

    x      : (B, C, H, W)  f32 or bf16
    fc1_w  : (C//r, C)     PyTorch Linear weight (out, in), no bias
    fc2_w  : (C, C//r)     PyTorch Linear weight (out, in), no bias
    returns (B, C, H, W), same dtype as x.
    """
    b, c, h, w = x.shape
    cr = fc1_w.shape[0]
    hw = h * w
    itemsize = jnp.dtype(x.dtype).itemsize
    inv_hw = 1.0 / float(hw)
    vmem_limit = _vmem_limit_bytes()

    x3 = x.reshape(b, c, hw)                       # free reshape (contiguous)
    # Merge the two tiny FC weights -> one DMA stream / one VMEM block.
    w_cat = jnp.concatenate([fc1_w.T.astype(jnp.float32),
                             fc2_w.astype(jnp.float32)], axis=1)  # (C, 2*Cr)

    per_image_bytes = c * hw * itemsize
    if per_image_bytes <= max_fused_block_bytes:
        tb = _pick_tb(b, per_image_bytes, target_block_bytes)
        out3 = _se_fused(x3, w_cat, cr=cr, tb=tb, inv_hw=inv_hw,
                         vmem_limit=vmem_limit)
    else:
        out3 = _se_tiled(x3, w_cat, cr=cr, inv_hw=inv_hw,
                         target_block_bytes=target_block_bytes,
                         vmem_limit=vmem_limit)
    return out3.reshape(b, c, h, w)


# ----------------------------------------------------------------------------
# Pure-JAX reference (mirrors the PyTorch module; math in f32)
# ----------------------------------------------------------------------------
def se_module_ref(x, fc1_w, fc2_w):
    xf = x.astype(jnp.float32)
    y = jnp.mean(xf, axis=(2, 3))                                # avg pool
    y = jnp.maximum(y @ fc1_w.T, 0.0)                            # fc1 + ReLU
    y = y @ fc2_w.T                                              # fc2
    y = jnp.minimum(jnp.maximum(y + 3.0, 0.0), 6.0) / 6.0        # Hsigmoid
    return xf * y[:, :, None, None]


if __name__ == "__main__":
    key = jax.random.PRNGKey(0)
    kx, k1, k2, kx2 = jax.random.split(key, 4)

    B, C, H, W = 4, 64, 16, 16
    reduction = 4
    Cr = C // reduction

    x = jax.random.normal(kx, (B, C, H, W), jnp.float32)
    fc1_w = 0.2 * jax.random.normal(k1, (Cr, C), jnp.float32)    # (out, in)
    fc2_w = 0.2 * jax.random.normal(k2, (C, Cr), jnp.float32)    # (out, in)

    # 1) fused path, f32 (TB-batched blocks, batch grid length >= 2)
    out = jax.block_until_ready(se_module(x, fc1_w, fc2_w))
    ref = jax.block_until_ready(se_module_ref(x, fc1_w, fc2_w))
    assert out.shape == ref.shape and out.dtype == x.dtype
    assert jnp.allclose(out, ref, atol=1e-5, rtol=1e-5), \
        float(jnp.max(jnp.abs(out - ref)))

    # 2) fused path, bf16 I/O (f32 accumulation inside the kernel)
    xb = x.astype(jnp.bfloat16)
    outb = jax.block_until_ready(se_module(xb, fc1_w, fc2_w))
    refb = se_module_ref(xb, fc1_w, fc2_w)
    assert outb.dtype == jnp.bfloat16
    assert jnp.allclose(outb.astype(jnp.float32), refb, atol=3e-2, rtol=3e-2)

    # 3) spatial-tiled fallback (forced), ragged 14x14=196 spatial extent
    B2, H2, W2 = 3, 14, 14
    x2 = jax.random.normal(kx2, (B2, C, H2, W2), jnp.float32)
    out2 = jax.block_until_ready(
        se_module(x2, fc1_w, fc2_w,
                  target_block_bytes=C * 128 * 4,   # -> 128-lane spatial tiles
                  max_fused_block_bytes=0))         # force the tiled path
    ref2 = se_module_ref(x2, fc1_w, fc2_w)
    assert jnp.allclose(out2, ref2, atol=1e-5, rtol=1e-5), \
        float(jnp.max(jnp.abs(out2 - ref2)))

    print("KERNEL_OK")
</pallas_src>

<mosaic_0001>
module attributes {stable_mosaic.version = 11 : i64} {
  func.func @_se_fused_kernel(%arg0: i32, %arg1: memref<2x64x256xf32, #tpu.memory_space<vmem>>, %arg2: memref<64x32xf32, #tpu.memory_space<vmem>>, %arg3: memref<2x64x256xf32, #tpu.memory_space<vmem>>) attributes {dimension_semantics = [#tpu.dimension_semantics<parallel>], iteration_bounds = array<i64: 2>, scalar_prefetch = 0 : i64, scratch_operands = 0 : i64, tpu.core_type = #tpu.core_type<tc>, window_params = [{transform_indices = @transform_0, window_bounds = array<i64: 2, 64, 256>}, {pipeline_mode = #tpu.pipeline_mode<synchronous>, transform_indices = @transform_1, window_bounds = array<i64: 64, 32>}, {transform_indices = @transform_2, window_bounds = array<i64: 2, 64, 256>}]} {
    %c0 = arith.constant 0 : index
    %c0_0 = arith.constant 0 : index
    %0 = vector.load %arg2[%c0, %c0_0] : memref<64x32xf32, #tpu.memory_space<vmem>>, vector<64x16xf32>
    %c0_1 = arith.constant 0 : index
    %c16 = arith.constant 16 : index
    %1 = vector.load %arg2[%c0_1, %c16] : memref<64x32xf32, #tpu.memory_space<vmem>>, vector<64x16xf32>
    %c0_2 = arith.constant 0 : index
    %c0_3 = arith.constant 0 : index
    %c0_4 = arith.constant 0 : index
    %2 = vector.load %arg1[%c0_2, %c0_3, %c0_4] : memref<2x64x256xf32, #tpu.memory_space<vmem>>, vector<2x64x256xf32>
    %cst = arith.constant dense<0.000000e+00> : vector<2x64xf32>
    %3 = vector.multi_reduction <add>, %2, %cst [2] : vector<2x64x256xf32> to vector<2x64xf32>
    %4 = vector.shape_cast %3 : vector<2x64xf32> to vector<2x64x1xf32>
    %cst_5 = arith.constant 3.906250e-03 : f32
    %5 = vector.broadcast %cst_5 : f32 to vector<2x64x1xf32>
    %6 = arith.mulf %4, %5 : vector<2x64x1xf32>
    %7 = vector.shape_cast %0 : vector<64x16xf32> to vector<1x64x16xf32>
    %8 = vector.broadcast %6 : vector<2x64x1xf32> to vector<2x64x16xf32>
    %9 = vector.broadcast %7 : vector<1x64x16xf32> to vector<2x64x16xf32>
    %10 = arith.mulf %8, %9 : vector<2x64x16xf32>
    %cst_6 = arith.constant dense<0.000000e+00> : vector<2x16xf32>
    %11 = vector.multi_reduction <add>, %10, %cst_6 [1] : vector<2x64x16xf32> to vector<2x16xf32>
    %cst_7 = arith.constant 0.000000e+00 : f32
    %12 = vector.broadcast %cst_7 : f32 to vector<2x16xf32>
    %13 = arith.maximumf %11, %12 : vector<2x16xf32>
    %14 = vector.shape_cast %13 : vector<2x16xf32> to vector<2x1x16xf32>
    %15 = vector.shape_cast %1 : vector<64x16xf32> to vector<1x64x16xf32>
    %16 = vector.broadcast %14 : vector<2x1x16xf32> to vector<2x64x16xf32>
    %17 = vector.broadcast %15 : vector<1x64x16xf32> to vector<2x64x16xf32>
    %18 = arith.mulf %16, %17 : vector<2x64x16xf32>
    %cst_8 = arith.constant dense<0.000000e+00> : vector<2x64xf32>
    %19 = vector.multi_reduction <add>, %18, %cst_8 [2] : vector<2x64x16xf32> to vector<2x64xf32>
    %20 = vector.shape_cast %19 : vector<2x64xf32> to vector<2x64x1xf32>
    %cst_9 = arith.constant 3.000000e+00 : f32
    %21 = vector.broadcast %cst_9 : f32 to vector<2x64x1xf32>
    %22 = arith.addf %20, %21 : vector<2x64x1xf32>
    %cst_10 = arith.constant 0.000000e+00 : f32
    %cst_11 = arith.constant 6.000000e+00 : f32
    %23 = vector.broadcast %cst_10 : f32 to vector<2x64x1xf32>
    %24 = arith.maximumf %23, %22 : vector<2x64x1xf32>
    %25 = vector.broadcast %cst_11 : f32 to vector<2x64x1xf32>
    %26 = arith.minimumf %25, %24 : vector<2x64x1xf32>
    %cst_12 = arith.constant 0.166666672 : f32
    %27 = vector.broadcast %cst_12 : f32 to vector<2x64x1xf32>
    %28 = arith.mulf %26, %27 : vector<2x64x1xf32>
    %c0_13 = arith.constant 0 : index
    %c0_14 = arith.constant 0 : index
    %c0_15 = arith.constant 0 : index
    %29 = vector.load %arg1[%c0_13, %c0_14, %c0_15] : memref<2x64x256xf32, #tpu.memory_space<vmem>>, vector<2x64x256xf32>
    %30 = vector.broadcast %28 : vector<2x64x1xf32> to vector<2x64x256xf32>
    %31 = arith.mulf %29, %30 : vector<2x64x256xf32>
    %c0_16 = arith.constant 0 : index
    %c0_17 = arith.constant 0 : index
    %c0_18 = arith.constant 0 : index
    %32 = vector.load %arg3[%c0_16, %c0_17, %c0_18] : memref<2x64x256xf32, #tpu.memory_space<vmem>>, vector<2x64x256xf32>
    tpu.vector_store %arg3[%c0_16, %c0_17, %c0_18], %31 {strides = array<i32>} : memref<2x64x256xf32, #tpu.memory_space<vmem>>, vector<2x64x256xf32>,
    return
  }
  func.func @transform_0(%arg0: i32) -> (i32, i32, i32) {
    %c0_i32 = arith.constant 0 : i32
    %c0_i32_0 = arith.constant 0 : i32
    %c0_i32_1 = arith.constant 0 : i32
    return %arg0, %c0_i32, %c0_i32_0 : i32, i32, i32
  }
  func.func @transform_1(%arg0: i32) -> (i32, i32) {
    %c0_i32 = arith.constant 0 : i32
    %c0_i32_0 = arith.constant 0 : i32
    %c0_i32_1 = arith.constant 0 : i32
    return %c0_i32, %c0_i32_0 : i32, i32
  }
  func.func @transform_2(%arg0: i32) -> (i32, i32, i32) {
    %c0_i32 = arith.constant 0 : i32
    %c0_i32_0 = arith.constant 0 : i32
    %c0_i32_1 = arith.constant 0 : i32
    return %arg0, %c0_i32, %c0_i32_0 : i32, i32, i32
  }
}

</mosaic_0001>

<llo_original>
// kernel: tpu_custom_call.1
$region0: #{tpu_custom_call.1}
  #allocation0 [shape = 'u32[]', space=smem, size = 0x4, offset = 0x4, fixed_abs, tag = 'smem constant byte address 0x4 - core index']
  #allocation1 [shape = 'u32[144,128]{1,0:T(1,128)}', space=vmem, size = 0x12000, scoped, tag = 'internal scratch']
  %s0 = inlined_call_operand.hbm [shape: f32[4,64,256], index: 0, kind: input, shape index: {}]
  %s1 = inlined_call_operand.vmem [shape: f32[64,32], index: 1, kind: input, shape index: {}]
  %s2 = inlined_call_operand.hbm [shape: f32[4,64,256], index: 2, kind: output, shape index: {}]
  %s3 = sld [smem:[#allocation0]]
  $region45: #{tpu_custom_call.1} parent=0
    _
  %s5 = ssub.s32 1, %s3
  %s6 = scalar_select 0, %s5, %s3
  $region1: #{tpu_custom_call.1} parent=0
    #allocation2 [shape = 'u8[262144]{0}', space=vmem, size = 0x40000, scoped, tag = 'input window, operand 0']
    #allocation3 [shape = 's32[2]{0}', space=sflag, size = 0x8, scoped, tag = 'scoped memory for tpu_custom_call.1']
    #allocation4 [shape = 's32[2]{0}', space=sflag, size = 0x8, scoped, tag = 'scoped memory for tpu_custom_call.1']
    #allocation5 [shape = 'u8[262144]{0}', space=vmem, size = 0x40000, scoped, tag = 'output window, operand 0']
    %7 = vsyncpa [#allocation3], 0
    %s8 = scalar_lea.sflag [#allocation3], 1
    %9 = vsyncpa %s8, 0
    %10 = vsyncpa [#allocation4], 0
    %s11 = scalar_lea.sflag [#allocation4], 1
    %12 = vsyncpa %s11, 0
    loop: start=0, step=1, limit=4
    $region2: #{tpu_custom_call.1} parent=1 // loop_pre_header
      _
    $region3: #{tpu_custom_call.1} parent=1 // loop_header
      %s14 = sphi 0, %s18
      %p15 = scmp.ge.s32.totalorder %s14, 4
      %s24 = sphi 0, %s26
      %s27 = sphi 0, %s24
      %s28 = sphi 0, %s27
      %s44 = sphi 0, %s28
      %s48 = sphi 0, %s48
      %s50 = sphi 0, %s48
      %s51 = sphi 0, %s50
      %s65 = sphi 0, %s51
      %s71 = sphi 0, %s73
      %s74 = sphi 0, %s71
      %s75 = sphi 0, %s74
      %s91 = sphi 0, %s75
    $region4: #{tpu_custom_call.1} parent=1 // loop_header_branch
      %17 = sbr.rel (%p15) target = $region8
    $region5: #{tpu_custom_call.1} parent=1 // loop_body
      %s19 = ssub.s32 %s14, 1
      %s20 = ssub.s32 %s14, 2
      %s21 = sadd.s32 %s14, 1
      %s22 = ssub.s32 %s14, %s21
      %p23 = scmp.eq.s32.totalorder %s22, 0
      %s25 = sadd.s32 %s24, 1
      %s26 = scalar_select %p23, %s24, %s25
      %p29 = pneg %p23
      %p30 = scmp.eq.s32.totalorder %s14, 1
      %p31 = por %p29, %p30
      %p32 = scmp.ne.s32.totalorder %s24, %s27
      %p33 = scmp.eq.s32.totalorder %s14, 0
      %p34 = por %p32, %p33
      %p35 = scmp.ne.s32.totalorder %s24, %s27
      %p36 = scmp.eq.s32.totalorder %s19, 1
      %p37 = por %p35, %p36
      %p38 = scmp.ne.s32.totalorder %s27, %s28
      %p39 = scmp.eq.s32.totalorder %s19, 0
      %p40 = por %p38, %p39
      %p41 = scmp.ne.s32.totalorder %s27, %s28
      %p42 = scmp.eq.s32.totalorder %s20, 1
      %p43 = por %p41, %p42
      %p45 = scmp.ne.s32.totalorder %s28, %s44
      %p46 = scmp.eq.s32.totalorder %s20, 0
      %p47 = por %p45, %p46
      %s49 = sadd.s32 %s48, 1
      %p52 = scmp.eq.s32.totalorder %s14, 1
      %p53 = scmp.ne.s32.totalorder %s48, %s50
      %p54 = scmp.eq.s32.totalorder %s14, 0
      %p55 = por %p53, %p54
      %p56 = scmp.ne.s32.totalorder %s48, %s50
      %p57 = scmp.eq.s32.totalorder %s19, 1
      %p58 = por %p56, %p57
      %p59 = scmp.ne.s32.totalorder %s50, %s51
      %p60 = scmp.eq.s32.totalorder %s19, 0
      %p61 = por %p59, %p60
      %p62 = scmp.ne.s32.totalorder %s50, %s51
      %p63 = scmp.eq.s32.totalorder %s20, 1
      %p64 = por %p62, %p63
      %p66 = scmp.ne.s32.totalorder %s51, %s65
      %p67 = scmp.eq.s32.totalorder %s20, 0
      %p68 = por %p66, %p67
      %s69 = ssub.s32 %s14, %s21
      %p70 = scmp.eq.s32.totalorder %s69, 0
      %s72 = sadd.s32 %s71, 1
      %s73 = scalar_select %p70, %s71, %s72
      %p76 = pneg %p70
      %p77 = scmp.eq.s32.totalorder %s14, 1
      %p78 = por %p76, %p77
      %p79 = scmp.ne.s32.totalorder %s71, %s74
      %p80 = scmp.eq.s32.totalorder %s14, 0
      %p81 = por %p79, %p80
      %p82 = scmp.ne.s32.totalorder %s71, %s74
      %p83 = scmp.eq.s32.totalorder %s19, 1
      %p84 = por %p82, %p83
      %p85 = scmp.ne.s32.totalorder %s74, %s75
      %p86 = scmp.eq.s32.totalorder %s19, 0
      %p87 = por %p85, %p86
      %p88 = scmp.ne.s32.totalorder %s74, %s75
      %p89 = scmp.eq.s32.totalorder %s20, 1
      %p90 = por %p88, %p89
      %p92 = scmp.ne.s32.totalorder %s75, %s91
      %p93 = scmp.eq.s32.totalorder %s20, 0
      %p94 = por %p92, %p93
      %p95 = scmp.le.s32.totalorder 1, %s14
      %p96 = scmp.lt.s32.totalorder %s14, 3
      %p97 = pnand %p95, %p96
      %p98 = pneg %p97
      // Predicated region
      $region9: #{tpu_custom_call.1} parent=5 // pred_check
        _
      $region10: #{tpu_custom_call.1} parent=5 // pred_check_branch
        %100 = sbr.rel (%p97) target = $region12
      $region11: #{tpu_custom_call.1} parent=5 // pred_region
        %s101 = ssub.s32 %s14, 1
        // Predicated region
        $region13: #{tpu_custom_call.1} parent=11 // pred_check
          %p102 = pneg %p61
        $region14: #{tpu_custom_call.1} parent=11 // pred_check_branch
          %104 = sbr.rel (%p102) target = $region16
        $region15: #{tpu_custom_call.1} parent=11 // pred_region
          _
        $region16: #{tpu_custom_call.1} parent=11 // pred_fallthru
          _
      $region12: #{tpu_custom_call.1} parent=5 // pred_fallthru
        _
      %p105 = scmp.lt.s32.totalorder %s14, 2
      // Predicated region
      $region17: #{tpu_custom_call.1} parent=5 // pred_check
        %p106 = pneg %p105
      $region18: #{tpu_custom_call.1} parent=5 // pred_check_branch
        %108 = sbr.rel (%p106) target = $region20
      $region19: #{tpu_custom_call.1} parent=5 // pred_region
        // Predicated region
        $region21: #{tpu_custom_call.1} parent=19 // pred_check
          %p109 = pneg %p34
        $region22: #{tpu_custom_call.1} parent=19 // pred_check_branch
          %111 = sbr.rel (%p109) target = $region24
        $region23: #{tpu_custom_call.1} parent=19 // pred_region
          %s112 = sand.u32 %s24, 1
          %s113 = scalar_lea.sflag [#allocation3], %s112
          %s114 = sand.u32 %s24, 1
          %s115 = smul.addr %s114, 256
          %s116 = scalar_lea.vmem [#allocation2], %s115
          %s117 = smul.u32 2, %s14
          %s119 = ssub.s32 4096, 4096
          %120 = vsyncadd %s113, %s119
          %s121 = smul.addr %s117, 16
          %s122 = smul.addr %s121, 128
          %s123 = scalar_lea.hbm %s0, %s122
          %s124 = sshll.u32 %s116, 4
          %s125 = int_to_ptr.vmem [resolvable:$true] %s124
          %130 = dma.hbm_to_vmem [thread:$0]  %s123, 4096, %s125, %s113, 256, 256, 16
        $region24: #{tpu_custom_call.1} parent=19 // pred_fallthru
          _
      $region20: #{tpu_custom_call.1} parent=5 // pred_fallthru
        _
      %p131 = scmp.le.s32.totalorder 1, %s14
      %p132 = scmp.lt.s32.totalorder %s14, 3
      %p133 = pnand %p131, %p132
      %p134 = pneg %p133
      // Predicated region
      $region25: #{tpu_custom_call.1} parent=5 // pred_check
        _
      $region26: #{tpu_custom_call.1} parent=5 // pred_check_branch
        %136 = sbr.rel (%p133) target = $region28
      $region27: #{tpu_custom_call.1} parent=5 // pred_region
        %s137 = ssub.s32 %s14, 1
        %s138 = sand.u32 %s27, 1
        %s139 = scalar_lea.sflag [#allocation3], %s138
        %s140 = sand.u32 %s27, 1
        %s141 = smul.addr %s140, 256
        %s142 = scalar_lea.vmem [#allocation2], %s141
        // Predicated region
        $region29: #{tpu_custom_call.1} parent=27 // pred_check
          %p143 = pneg %p40
        $region30: #{tpu_custom_call.1} parent=27 // pred_check_branch
          %145 = sbr.rel (%p143) target = $region32
        $region31: #{tpu_custom_call.1} parent=27 // pred_region
          %146 = dma.done %s139, 4096
        $region32: #{tpu_custom_call.1} parent=27 // pred_fallthru
          _
        %s147 = sand.u32 %s27, 1
        %s148 = scalar_lea.sflag [#allocation3], %s147
        %s149 = sand.u32 %s27, 1
        %s150 = smul.addr %s149, 256
        %s151 = scalar_lea.vmem [#allocation2], %s150
        %p152 = pneg %p40
        %p153 = pneg %p37
        %p154 = pneg %p61
        %p155 = pneg %p58
        %p156 = pneg %p87
        %p157 = pneg %p84
        %s158 = sand.u32 %s74, 1
        %s159 = scalar_lea.sflag [#allocation4], %s158
        %s160 = sand.u32 %s74, 1
        %s161 = smul.addr %s160, 256
        %s162 = scalar_lea.vmem [#allocation5], %s161
        %s163 = smul.u32 2, %s19
        %s164 = smul.u32 2, %s19
        %v165 = vld [vmem:[%s1] sm:$0xff]
        %v166 = vld [vmem:[%s1 + $0x8] sm:$0xff]
        %v167 = vld [vmem:[%s1 + $0x10] sm:$0xff]
        %v168 = vld [vmem:[%s1 + $0x18] sm:$0xff]
        %v169 = vld [vmem:[%s1 + $0x20] sm:$0xff]
        %v170 = vld [vmem:[%s1 + $0x28] sm:$0xff]
        %v171 = vld [vmem:[%s1 + $0x30] sm:$0xff]
        %v172 = vld [vmem:[%s1 + $0x38] sm:$0xff]
        %v173 = vld [vmem:[%s142] sm:$0xff]
        %v174 = vld [vmem:[%s142 + $0x8] sm:$0xff]
        %v175 = vld [vmem:[%s142 + $0x10] sm:$0xff]
        %v176 = vld [vmem:[%s142 + $0x18] sm:$0xff]
        %v177 = vld [vmem:[%s142 + $0x20] sm:$0xff]
        %v178 = vld [vmem:[%s142 + $0x28] sm:$0xff]
        %v179 = vld [vmem:[%s142 + $0x30] sm:$0xff]
        %v180 = vld [vmem:[%s142 + $0x38] sm:$0xff]
        %v181 = vld [vmem:[%s142 + $0x40] sm:$0xff]
        %v182 = vld [vmem:[%s142 + $0x48] sm:$0xff]
        %v183 = vld [vmem:[%s142 + $0x50] sm:$0xff]
        %v184 = vld [vmem:[%s142 + $0x58] sm:$0xff]
        %v185 = vld [vmem:[%s142 + $0x60] sm:$0xff]
        %v186 = vld [vmem:[%s142 + $0x68] sm:$0xff]
        %v187 = vld [vmem:[%s142 + $0x70] sm:$0xff]
        %v188 = vld [vmem:[%s142 + $0x78] sm:$0xff]
        %v189 = vld [vmem:[%s142 + $0x80] sm:$0xff]
        %v190 = vld [vmem:[%s142 + $0x88] sm:$0xff]
        %v191 = vld [vmem:[%s142 + $0x90] sm:$0xff]
        %v192 = vld [vmem:[%s142 + $0x98] sm:$0xff]
        %v193 = vld [vmem:[%s142 + $0xa0] sm:$0xff]
        %v194 = vld [vmem:[%s142 + $0xa8] sm:$0xff]
        %v195 = vld [vmem:[%s142 + $0xb0] sm:$0xff]
        %v196 = vld [vmem:[%s142 + $0xb8] sm:$0xff]
        %v197 = vld [vmem:[%s142 + $0xc0] sm:$0xff]
        %v198 = vld [vmem:[%s142 + $0xc8] sm:$0xff]
        %v199 = vld [vmem:[%s142 + $0xd0] sm:$0xff]
        %v200 = vld [vmem:[%s142 + $0xd8] sm:$0xff]
        %v201 = vld [vmem:[%s142 + $0xe0] sm:$0xff]
        %v202 = vld [vmem:[%s142 + $0xe8] sm:$0xff]
        %v203 = vld [vmem:[%s142 + $0xf0] sm:$0xff]
        %v204 = vld [vmem:[%s142 + $0xf8] sm:$0xff]
        %v205 = vadd.f32 %v173, %v174
        %206 = vadd.xlane.f32.xlu0 %v205
        %v207 = vpop.xlane.xlu0 %206
        %v208 = vadd.f32 %v175, %v176
        %209 = vadd.xlane.f32.xlu0 %v208
        %v210 = vpop.xlane.xlu0 %209
        %v211 = vadd.f32 %v177, %v178
        %212 = vadd.xlane.f32.xlu0 %v211
        %v213 = vpop.xlane.xlu0 %212
        %v214 = vadd.f32 %v179, %v180
        %215 = vadd.xlane.f32.xlu0 %v214
        %v216 = vpop.xlane.xlu0 %215
        %v217 = vadd.f32 %v181, %v182
        %218 = vadd.xlane.f32.xlu0 %v217
        %v219 = vpop.xlane.xlu0 %218
        %v220 = vadd.f32 %v183, %v184
        %221 = vadd.xlane.f32.xlu0 %v220
        %v222 = vpop.xlane.xlu0 %221
        %v223 = vadd.f32 %v185, %v186
        %224 = vadd.xlane.f32.xlu0 %v223
        %v225 = vpop.xlane.xlu0 %224
        %v226 = vadd.f32 %v187, %v188
        %227 = vadd.xlane.f32.xlu0 %v226
        %v228 = vpop.xlane.xlu0 %227
        %v229 = vadd.f32 %v189, %v190
        %230 = vadd.xlane.f32.xlu0 %v229
        %v231 = vpop.xlane.xlu0 %230
        %v232 = vadd.f32 %v191, %v192
        %233 = vadd.xlane.f32.xlu0 %v232
        %v234 = vpop.xlane.xlu0 %233
        %v235 = vadd.f32 %v193, %v194
        %236 = vadd.xlane.f32.xlu0 %v235
        %v237 = vpop.xlane.xlu0 %236
        %v238 = vadd.f32 %v195, %v196
        %239 = vadd.xlane.f32.xlu0 %v238
        %v240 = vpop.xlane.xlu0 %239
        %v241 = vadd.f32 %v197, %v198
        %242 = vadd.xlane.f32.xlu0 %v241
        %v243 = vpop.xlane.xlu0 %242
        %v244 = vadd.f32 %v199, %v200
        %245 = vadd.xlane.f32.xlu0 %v244
        %v246 = vpop.xlane.xlu0 %245
        %v247 = vadd.f32 %v201, %v202
        %248 = vadd.xlane.f32.xlu0 %v247
        %v249 = vpop.xlane.xlu0 %248
        %v250 = vadd.f32 %v203, %v204
        %251 = vadd.xlane.f32.xlu0 %v250
        %v252 = vpop.xlane.xlu0 %251
        %v253 = vmul.f32 %v207, 0.00390625
        %v254 = vmul.f32 %v210, 0.00390625
        %v255 = vmul.f32 %v213, 0.00390625
        %v256 = vmul.f32 %v216, 0.00390625
        %v257 = vmul.f32 %v219, 0.00390625
        %v258 = vmul.f32 %v222, 0.00390625
        %v259 = vmul.f32 %v225, 0.00390625
        %v260 = vmul.f32 %v228, 0.00390625
        %v261 = vmul.f32 %v231, 0.00390625
        %v262 = vmul.f32 %v234, 0.00390625
        %v263 = vmul.f32 %v237, 0.00390625
        %v264 = vmul.f32 %v240, 0.00390625
        %v265 = vmul.f32 %v243, 0.00390625
        %v266 = vmul.f32 %v246, 0.00390625
        %v267 = vmul.f32 %v249, 0.00390625
        %v268 = vmul.f32 %v252, 0.00390625
        %v269 = vmul.f32 %v253, %v165
        %v270 = vmul.f32 %v254, %v166
        %v271 = vmul.f32 %v255, %v167
        %v272 = vmul.f32 %v256, %v168
        %v273 = vmul.f32 %v257, %v169
        %v274 = vmul.f32 %v258, %v170
        %v275 = vmul.f32 %v259, %v171
        %v276 = vmul.f32 %v260, %v172
        %v277 = vmul.f32 %v261, %v165
        %v278 = vmul.f32 %v262, %v166
        %v279 = vmul.f32 %v263, %v167
        %v280 = vmul.f32 %v264, %v168
        %v281 = vmul.f32 %v265, %v169
        %v282 = vmul.f32 %v266, %v170
        %v283 = vmul.f32 %v267, %v171
        %v284 = vmul.f32 %v268, %v172
        %vm285 = vcmask 130048
        %v286 = vsel %vm285, %v269, 0.0
        %v287 = vsel %vm285, %v270, 0.0
        %v288 = vadd.f32 %v286, %v287
        %v289 = vsel %vm285, %v271, 0.0
        %v290 = vadd.f32 %v288, %v289
        %v291 = vsel %vm285, %v272, 0.0
        %v292 = vadd.f32 %v290, %v291
        %v293 = vsel %vm285, %v273, 0.0
        %v294 = vadd.f32 %v292, %v293
        %v295 = vsel %vm285, %v274, 0.0
        %v296 = vadd.f32 %v294, %v295
        %v297 = vsel %vm285, %v275, 0.0
        %v298 = vadd.f32 %v296, %v297
        %v299 = vsel %vm285, %v276, 0.0
        %v300 = vadd.f32 %v298, %v299
        %v301 = vrot.slane %v300, 4
        %v302 = vadd.f32 %v300, %v301
        %v303 = vrot.slane %v302, 2
        %v304 = vadd.f32 %v302, %v303
        %v305 = vrot.slane %v304, 1
        %v306 = vadd.f32 %v304, %v305
        %v307 = vsel %vm285, %v277, 0.0
        %v308 = vsel %vm285, %v278, 0.0
        %v309 = vadd.f32 %v307, %v308
        %v310 = vsel %vm285, %v279, 0.0
        %v311 = vadd.f32 %v309, %v310
        %v312 = vsel %vm285, %v280, 0.0
        %v313 = vadd.f32 %v311, %v312
        %v314 = vsel %vm285, %v281, 0.0
        %v315 = vadd.f32 %v313, %v314
        %v316 = vsel %vm285, %v282, 0.0
        %v317 = vadd.f32 %v315, %v316
        %v318 = vsel %vm285, %v283, 0.0
        %v319 = vadd.f32 %v317, %v318
        %v320 = vsel %vm285, %v284, 0.0
        %v321 = vadd.f32 %v319, %v320
        %v322 = vrot.slane %v321, 4
        %v323 = vadd.f32 %v321, %v322
        %v324 = vrot.slane %v323, 2
        %v325 = vadd.f32 %v323, %v324
        %v326 = vrot.slane %v325, 1
        %v327 = vadd.f32 %v325, %v326
        %v328 = vmax.f32 %v306, 0.0
        %v329 = vmax.f32 %v327, 0.0
        %338 = vrot.lane.b32.xlu0 %v165, 112
        %v339 = vpop.permute.xlu0 %338
        %340 = vrot.lane.b32.xlu0 %v166, 112
        %v341 = vpop.permute.xlu0 %340
        %342 = vrot.lane.b32.xlu0 %v167, 112
        %v343 = vpop.permute.xlu0 %342
        %344 = vrot.lane.b32.xlu0 %v168, 112
        %v345 = vpop.permute.xlu0 %344
        %346 = vrot.lane.b32.xlu0 %v169, 112
        %v347 = vpop.permute.xlu0 %346
        %348 = vrot.lane.b32.xlu0 %v170, 112
        %v349 = vpop.permute.xlu0 %348
        %350 = vrot.lane.b32.xlu0 %v171, 112
        %v351 = vpop.permute.xlu0 %350
        %352 = vrot.lane.b32.xlu0 %v172, 112
        %v353 = vpop.permute.xlu0 %352
        %v362 = vmul.f32 %v328, %v339
        %v363 = vmul.f32 %v328, %v341
        %v364 = vmul.f32 %v328, %v343
        %v365 = vmul.f32 %v328, %v345
        %v366 = vmul.f32 %v328, %v347
        %v367 = vmul.f32 %v328, %v349
        %v368 = vmul.f32 %v328, %v351
        %v369 = vmul.f32 %v328, %v353
        %v370 = vmul.f32 %v329, %v339
        %v371 = vmul.f32 %v329, %v341
        %v372 = vmul.f32 %v329, %v343
        %v373 = vmul.f32 %v329, %v345
        %v374 = vmul.f32 %v329, %v347
        %v375 = vmul.f32 %v329, %v349
        %v376 = vmul.f32 %v329, %v351
        %v377 = vmul.f32 %v329, %v353
        %v378 = vsel %vm285, %v362, 0.0
        %379 = vadd.xlane.f32.xlu0 %v378
        %v380 = vpop.xlane.xlu0 %379
        %v381 = vsel %vm285, %v363, 0.0
        %382 = vadd.xlane.f32.xlu0 %v381
        %v383 = vpop.xlane.xlu0 %382
        %v384 = vsel %vm285, %v364, 0.0
        %385 = vadd.xlane.f32.xlu0 %v384
        %v386 = vpop.xlane.xlu0 %385
        %v387 = vsel %vm285, %v365, 0.0
        %388 = vadd.xlane.f32.xlu0 %v387
        %v389 = vpop.xlane.xlu0 %388
        %v390 = vsel %vm285, %v366, 0.0
        %391 = vadd.xlane.f32.xlu0 %v390
        %v392 = vpop.xlane.xlu0 %391
        %v393 = vsel %vm285, %v367, 0.0
        %394 = vadd.xlane.f32.xlu0 %v393
        %v395 = vpop.xlane.xlu0 %394
        %v396 = vsel %vm285, %v368, 0.0
        %397 = vadd.xlane.f32.xlu0 %v396
        %v398 = vpop.xlane.xlu0 %397
        %v399 = vsel %vm285, %v369, 0.0
        %400 = vadd.xlane.f32.xlu0 %v399
        %v401 = vpop.xlane.xlu0 %400
        %v402 = vsel %vm285, %v370, 0.0
        %403 = vadd.xlane.f32.xlu0 %v402
        %v404 = vpop.xlane.xlu0 %403
        %v405 = vsel %vm285, %v371, 0.0
        %406 = vadd.xlane.f32.xlu0 %v405
        %v407 = vpop.xlane.xlu0 %406
        %v408 = vsel %vm285, %v372, 0.0
        %409 = vadd.xlane.f32.xlu0 %v408
        %v410 = vpop.xlane.xlu0 %409
        %v411 = vsel %vm285, %v373, 0.0
        %412 = vadd.xlane.f32.xlu0 %v411
        %v413 = vpop.xlane.xlu0 %412
        %v414 = vsel %vm285, %v374, 0.0
        %415 = vadd.xlane.f32.xlu0 %v414
        %v416 = vpop.xlane.xlu0 %415
        %v417 = vsel %vm285, %v375, 0.0
        %418 = vadd.xlane.f32.xlu0 %v417
        %v419 = vpop.xlane.xlu0 %418
        %v420 = vsel %vm285, %v376, 0.0
        %421 = vadd.xlane.f32.xlu0 %v420
        %v422 = vpop.xlane.xlu0 %421
        %v423 = vsel %vm285, %v377, 0.0
        %424 = vadd.xlane.f32.xlu0 %v423
        %v425 = vpop.xlane.xlu0 %424
        %v426 = vadd.f32 %v380, 3.0
        %v427 = vadd.f32 %v383, 3.0
        %v428 = vadd.f32 %v386, 3.0
        %v429 = vadd.f32 %v389, 3.0
        %v430 = vadd.f32 %v392, 3.0
        %v431 = vadd.f32 %v395, 3.0
        %v432 = vadd.f32 %v398, 3.0
        %v433 = vadd.f32 %v401, 3.0
        %v434 = vadd.f32 %v404, 3.0
        %v435 = vadd.f32 %v407, 3.0
        %v436 = vadd.f32 %v410, 3.0
        %v437 = vadd.f32 %v413, 3.0
        %v438 = vadd.f32 %v416, 3.0
        %v439 = vadd.f32 %v419, 3.0
        %v440 = vadd.f32 %v422, 3.0
        %v441 = vadd.f32 %v425, 3.0
        %v442 = vmax.f32 %v426, 0.0
        %v443 = vmax.f32 %v427, 0.0
        %v444 = vmax.f32 %v428, 0.0
        %v445 = vmax.f32 %v429, 0.0
        %v446 = vmax.f32 %v430, 0.0
        %v447 = vmax.f32 %v431, 0.0
        %v448 = vmax.f32 %v432, 0.0
        %v449 = vmax.f32 %v433, 0.0
        %v450 = vmax.f32 %v434, 0.0
        %v451 = vmax.f32 %v435, 0.0
        %v452 = vmax.f32 %v436, 0.0
        %v453 = vmax.f32 %v437, 0.0
        %v454 = vmax.f32 %v438, 0.0
        %v455 = vmax.f32 %v439, 0.0
        %v456 = vmax.f32 %v440, 0.0
        %v457 = vmax.f32 %v441, 0.0
        %v458 = vmin.f32 %v442, 6.0
        %v459 = vmin.f32 %v443, 6.0
        %v460 = vmin.f32 %v444, 6.0
        %v461 = vmin.f32 %v445, 6.0
        %v462 = vmin.f32 %v446, 6.0
        %v463 = vmin.f32 %v447, 6.0
        %v464 = vmin.f32 %v448, 6.0
        %v465 = vmin.f32 %v449, 6.0
        %v466 = vmin.f32 %v450, 6.0
        %v467 = vmin.f32 %v451, 6.0
        %v468 = vmin.f32 %v452, 6.0
        %v469 = vmin.f32 %v453, 6.0
        %v470 = vmin.f32 %v454, 6.0
        %v471 = vmin.f32 %v455, 6.0
        %v472 = vmin.f32 %v456, 6.0
        %v473 = vmin.f32 %v457, 6.0
        %v474 = vmul.f32 %v458, 0.16666667
        %v475 = vmul.f32 %v459, 0.16666667
        %v476 = vmul.f32 %v460, 0.16666667
        %v477 = vmul.f32 %v461, 0.16666667
        %v478 = vmul.f32 %v462, 0.16666667
        %v479 = vmul.f32 %v463, 0.16666667
        %v480 = vmul.f32 %v464, 0.16666667
        %v481 = vmul.f32 %v465, 0.16666667
        %v482 = vmul.f32 %v466, 0.16666667
        %v483 = vmul.f32 %v467, 0.16666667
        %v484 = vmul.f32 %v468, 0.16666667
        %v485 = vmul.f32 %v469, 0.16666667
        %v486 = vmul.f32 %v470, 0.16666667
        %v487 = vmul.f32 %v471, 0.16666667
        %v488 = vmul.f32 %v472, 0.16666667
        %v489 = vmul.f32 %v473, 0.16666667
        %v490 = vmul.f32 %v173, %v474
        %v491 = vmul.f32 %v174, %v474
        %v492 = vmul.f32 %v175, %v475
        %v493 = vmul.f32 %v176, %v475
        %v494 = vmul.f32 %v177, %v476
        %v495 = vmul.f32 %v178, %v476
        %v496 = vmul.f32 %v179, %v477
        %v497 = vmul.f32 %v180, %v477
        %v498 = vmul.f32 %v181, %v478
        %v499 = vmul.f32 %v182, %v478
        %v500 = vmul.f32 %v183, %v479
        %v501 = vmul.f32 %v184, %v479
        %v502 = vmul.f32 %v185, %v480
        %v503 = vmul.f32 %v186, %v480
        %v504 = vmul.f32 %v187, %v481
        %v505 = vmul.f32 %v188, %v481
        %v506 = vmul.f32 %v189, %v482
        %v507 = vmul.f32 %v190, %v482
        %v508 = vmul.f32 %v191, %v483
        %v509 = vmul.f32 %v192, %v483
        %v510 = vmul.f32 %v193, %v484
        %v511 = vmul.f32 %v194, %v484
        %v512 = vmul.f32 %v195, %v485
        %v513 = vmul.f32 %v196, %v485
        %v514 = vmul.f32 %v197, %v486
        %v515 = vmul.f32 %v198, %v486
        %v516 = vmul.f32 %v199, %v487
        %v517 = vmul.f32 %v200, %v487
        %v518 = vmul.f32 %v201, %v488
        %v519 = vmul.f32 %v202, %v488
        %v520 = vmul.f32 %v203, %v489
        %v521 = vmul.f32 %v204, %v489
        %522 = vst [vmem:[%s162] sm:$0xff] %v490
        %523 = vst [vmem:[%s162 + $0x8] sm:$0xff] %v491
        %524 = vst [vmem:[%s162 + $0x10] sm:$0xff] %v492
        %525 = vst [vmem:[%s162 + $0x18] sm:$0xff] %v493
        %526 = vst [vmem:[%s162 + $0x20] sm:$0xff] %v494
        %527 = vst [vmem:[%s162 + $0x28] sm:$0xff] %v495
        %528 = vst [vmem:[%s162 + $0x30] sm:$0xff] %v496
        %529 = vst [vmem:[%s162 + $0x38] sm:$0xff] %v497
        %530 = vst [vmem:[%s162 + $0x40] sm:$0xff] %v498
        %531 = vst [vmem:[%s162 + $0x48] sm:$0xff] %v499
        %532 = vst [vmem:[%s162 + $0x50] sm:$0xff] %v500
        %533 = vst [vmem:[%s162 + $0x58] sm:$0xff] %v501
        %534 = vst [vmem:[%s162 + $0x60] sm:$0xff] %v502
        %535 = vst [vmem:[%s162 + $0x68] sm:$0xff] %v503
        %536 = vst [vmem:[%s162 + $0x70] sm:$0xff] %v504
        %537 = vst [vmem:[%s162 + $0x78] sm:$0xff] %v505
        %538 = vst [vmem:[%s162 + $0x80] sm:$0xff] %v506
        %539 = vst [vmem:[%s162 + $0x88] sm:$0xff] %v507
        %540 = vst [vmem:[%s162 + $0x90] sm:$0xff] %v508
        %541 = vst [vmem:[%s162 + $0x98] sm:$0xff] %v509
        %542 = vst [vmem:[%s162 + $0xa0] sm:$0xff] %v510
        %543 = vst [vmem:[%s162 + $0xa8] sm:$0xff] %v511
        %544 = vst [vmem:[%s162 + $0xb0] sm:$0xff] %v512
        %545 = vst [vmem:[%s162 + $0xb8] sm:$0xff] %v513
        %546 = vst [vmem:[%s162 + $0xc0] sm:$0xff] %v514
        %547 = vst [vmem:[%s162 + $0xc8] sm:$0xff] %v515
        %548 = vst [vmem:[%s162 + $0xd0] sm:$0xff] %v516
        %549 = vst [vmem:[%s162 + $0xd8] sm:$0xff] %v517
        %550 = vst [vmem:[%s162 + $0xe0] sm:$0xff] %v518
        %551 = vst [vmem:[%s162 + $0xe8] sm:$0xff] %v519
        %552 = vst [vmem:[%s162 + $0xf0] sm:$0xff] %v520
        %553 = vst [vmem:[%s162 + $0xf8] sm:$0xff] %v521
        %s554 = sand.u32 %s74, 1
        %s555 = scalar_lea.sflag [#allocation4], %s554
        %s556 = sand.u32 %s74, 1
        %s557 = smul.addr %s556, 256
        %s558 = scalar_lea.vmem [#allocation5], %s557
        // Predicated region
        $region33: #{tpu_custom_call.1} parent=27 // pred_check
          %p559 = pneg %p84
        $region34: #{tpu_custom_call.1} parent=27 // pred_check_branch
          %561 = sbr.rel (%p559) target = $region36
        $region35: #{tpu_custom_call.1} parent=27 // pred_region
          %s562 = smul.u32 2, %s19
          %s564 = ssub.s32 4096, 4096
          %565 = vsyncadd %s555, %s564
          %s566 = smul.addr %s562, 16
          %s567 = smul.addr %s566, 128
          %s568 = scalar_lea.hbm %s2, %s567
          %s569 = sshll.u32 %s558, 4
          %s570 = int_to_ptr.vmem [resolvable:$true] %s569
          %575 = dma.vmem_to_hbm [thread:$0]  %s570, 4096, %s568, %s555, 256, 256, 16
        $region36: #{tpu_custom_call.1} parent=27 // pred_fallthru
          _
      $region28: #{tpu_custom_call.1} parent=5 // pred_fallthru
        _
      %p576 = scmp.le.s32.totalorder 2, %s14
      // Predicated region
      $region37: #{tpu_custom_call.1} parent=5 // pred_check
        %p577 = pneg %p576
      $region38: #{tpu_custom_call.1} parent=5 // pred_check_branch
        %579 = sbr.rel (%p577) target = $region40
      $region39: #{tpu_custom_call.1} parent=5 // pred_region
        %s580 = ssub.s32 %s14, 2
        // Predicated region
        $region41: #{tpu_custom_call.1} parent=39 // pred_check
          %p581 = pneg %p90
        $region42: #{tpu_custom_call.1} parent=39 // pred_check_branch
          %583 = sbr.rel (%p581) target = $region44
        $region43: #{tpu_custom_call.1} parent=39 // pred_region
          %s584 = sand.u32 %s75, 1
          %s585 = scalar_lea.sflag [#allocation4], %s584
          %s586 = sand.u32 %s75, 1
          %s587 = smul.addr %s586, 256
          %s588 = scalar_lea.vmem [#allocation5], %s587
          %589 = dma.done %s585, 4096
        $region44: #{tpu_custom_call.1} parent=39 // pred_fallthru
          _
      $region40: #{tpu_custom_call.1} parent=5 // pred_fallthru
        _
    $region6: #{tpu_custom_call.1} parent=1 // loop_footer
      %s18 = sadd.s32 1, %s14
    $region7: #{tpu_custom_call.1} parent=1 // loop_footer_branch
      %13 = sbr.rel target = $region3
    $region8: #{tpu_custom_call.1} parent=1 // loop_exit
      _
    %590 = vsyncpa [#allocation3], 1
    %s591 = scalar_lea.sflag [#allocation3], 1
    %592 = vsyncpa %s591, 1
    %593 = vsyncpa [#allocation4], 1
    %s594 = scalar_lea.sflag [#allocation4], 1
    %595 = vsyncpa %s594, 1

</llo_original>
